<compile_context>
chip_gen: v6e
topology: v6e:2x2x1
jax: 0.10.0
libtpu: 0.0.40
codegen_flags: <defaults>
</compile_context>

<pallas_src>
from functools import partial

import jax
import jax.numpy as jnp
import numpy as np
from jax.experimental import pallas as pl
from jax.experimental.pallas import tpu as pltpu

K1, K2, K3 = 0.63576, 1.8732, 1.48695
_LANES = 128


def _kl_term(log_alpha):
    # kl_reg() of a LinearSVDO layer (returns a scalar).
    # 0.5*log1p(exp(-x)) == 0.5*softplus(-x); use the numerically-stable softplus form.
    softplus_neg = jnp.maximum(-log_alpha, 0.0) + jnp.log1p(jnp.exp(-jnp.abs(log_alpha)))
    t = K1 * jax.nn.sigmoid(K2 + K3 * log_alpha) - 0.5 * softplus_neg - K1
    return -jnp.sum(t)


def sgvlb_kernel(logits_ref, tgt_ref, la1_ref, la2_ref, scal_ref, out_ref):
    # ---- cross entropy (sum over batch; mean scaling folded into ce_scale) ----
    logits = logits_ref[...].astype(jnp.float32)             # [B, C]
    tgt = tgt_ref[...]                                        # [B, 1] int32
    B, C = logits.shape

    m = jnp.max(logits, axis=-1, keepdims=True)               # [B, 1]
    lse = jnp.log(jnp.sum(jnp.exp(logits - m), axis=-1, keepdims=True)) + m

    col = jax.lax.broadcasted_iota(jnp.int32, (B, C), 1)      # [B, C]
    # single select instead of one-hot cast + multiply (saves 2 VPU ops / vreg)
    tgt_logit = jnp.sum(jnp.where(col == tgt, logits, 0.0), axis=-1, keepdims=True)

    ce_sum = jnp.sum(lse - tgt_logit)                          # scalar (sum, not mean)

    # ---- KL regularizer: two lane-dense log_alpha buffers, no padding/correction ----
    kl = (_kl_term(la1_ref[...].astype(jnp.float32))
          + _kl_term(la2_ref[...].astype(jnp.float32)))

    ce_scale = scal_ref[0]        # train_size / B
    kl_weight = scal_ref[1]
    out_ref[0, 0] = ce_sum * ce_scale + kl_weight * kl


def _lane_dense(x):
    # Free row-major reshape of a contiguous parameter tensor into (rows, 128)
    # when the element count allows it; otherwise pass through as f32 2D.
    flat = x.reshape(-1).astype(jnp.float32)
    n = flat.shape[0]
    if n % _LANES == 0:
        return flat.reshape(-1, _LANES)
    return x.astype(jnp.float32)


@jax.jit
def sgvlb_loss(logits, targets, log_alpha1, log_alpha2, train_size, kl_weight=1.0):
    B, C = logits.shape
    tgt2d = targets.reshape(B, 1).astype(jnp.int32)

    la1 = _lane_dense(log_alpha1)          # (16, 128) for (64, 32)
    la2 = _lane_dense(log_alpha2)          # (8, 128)  for (16, 64)

    ce_scale = jnp.asarray(train_size, jnp.float32) / jnp.float32(B)
    scalars = jnp.stack([ce_scale, jnp.asarray(kl_weight, jnp.float32)])

    kl_elems = int(la1.size) + int(la2.size)
    cost = pl.CostEstimate(
        flops=10 * B * C + 8 * kl_elems,
        transcendentals=3 * kl_elems + B * C,
        bytes_accessed=int(logits.size) * logits.dtype.itemsize
        + int(tgt2d.size) * 4 + kl_elems * 4 + int(scalars.size) * 4 + 4,
    )

    out = pl.pallas_call(
        sgvlb_kernel,
        out_shape=jax.ShapeDtypeStruct((1, 1), jnp.float32),
        in_specs=[
            pl.BlockSpec(memory_space=pltpu.MemorySpace.VMEM),   # logits
            pl.BlockSpec(memory_space=pltpu.MemorySpace.VMEM),   # targets [B,1]
            pl.BlockSpec(memory_space=pltpu.MemorySpace.VMEM),   # log_alpha layer 1
            pl.BlockSpec(memory_space=pltpu.MemorySpace.VMEM),   # log_alpha layer 2
            pl.BlockSpec(memory_space=pltpu.MemorySpace.SMEM),   # scalars
        ],
        out_specs=pl.BlockSpec(memory_space=pltpu.MemorySpace.SMEM),
        cost_estimate=cost,
    )(logits, tgt2d, la1, la2, scalars)
    return out[0, 0]


def sgvlb_reference(logits, targets, log_alpha1, log_alpha2, train_size, kl_weight=1.0):
    logits = logits.astype(jnp.float32)
    logp = jax.nn.log_softmax(logits, axis=-1)
    ce = -jnp.mean(jnp.take_along_axis(logp, targets[:, None], axis=-1))
    kl = _kl_term(log_alpha1) + _kl_term(log_alpha2)
    return ce * train_size + kl_weight * kl


if __name__ == "__main__":
    key = jax.random.PRNGKey(0)
    k_logits, k_tgt, k_la1, k_la2 = jax.random.split(key, 4)

    B, C = 8, 16            # batch, num classes
    IN, HID = 32, 64        # synthetic net: LinearSVDO(32->64), LinearSVDO(64->16)
    TRAIN_SIZE = 60000
    KL_WEIGHT = 1.0

    logits = jax.random.normal(k_logits, (B, C), dtype=jnp.float32)
    targets = jax.random.randint(k_tgt, (B,), 0, C, dtype=jnp.int32)
    # log_alpha parameters (synthetic init around -3, typical at start of training)
    log_alpha1 = -3.0 + 0.1 * jax.random.normal(k_la1, (HID, IN), dtype=jnp.float32)
    log_alpha2 = -3.0 + 0.1 * jax.random.normal(k_la2, (C, HID), dtype=jnp.float32)

    loss = sgvlb_loss(logits, targets, log_alpha1, log_alpha2, TRAIN_SIZE, KL_WEIGHT)
    loss = jax.block_until_ready(loss)

    ref = sgvlb_reference(logits, targets, log_alpha1, log_alpha2, TRAIN_SIZE, KL_WEIGHT)
    ref = jax.block_until_ready(ref)

    assert np.allclose(np.asarray(loss), np.asarray(ref), rtol=1e-4, atol=1e-3), (loss, ref)
    print("KERNEL_OK")
</pallas_src>

<mosaic_0001>
module attributes {stable_mosaic.version = 11 : i64} {
  func.func @sgvlb_kernel(%arg0: memref<8x16xf32, #tpu.memory_space<vmem>>, %arg1: memref<8x1xi32, #tpu.memory_space<vmem>>, %arg2: memref<16x128xf32, #tpu.memory_space<vmem>>, %arg3: memref<8x128xf32, #tpu.memory_space<vmem>>, %arg4: memref<2xf32, #tpu.memory_space<smem>>, %arg5: memref<1x1xf32, #tpu.memory_space<smem>>) attributes {dimension_semantics = [], scalar_prefetch = 0 : i64, scratch_operands = 0 : i64, tpu.core_type = #tpu.core_type<tc>} {
    %c0 = arith.constant 0 : index
    %c0_0 = arith.constant 0 : index
    %0 = vector.load %arg0[%c0, %c0_0] : memref<8x16xf32, #tpu.memory_space<vmem>>, vector<8x16xf32>
    %c0_1 = arith.constant 0 : index
    %c0_2 = arith.constant 0 : index
    %1 = vector.load %arg1[%c0_1, %c0_2] : memref<8x1xi32, #tpu.memory_space<vmem>>, vector<8x1xi32>
    %cst = arith.constant dense<0xFF800000> : vector<8xf32>
    %2 = vector.multi_reduction <maximumf>, %0, %cst [1] : vector<8x16xf32> to vector<8xf32>
    %3 = vector.shape_cast %2 : vector<8xf32> to vector<8x1xf32>
    %4 = vector.broadcast %3 : vector<8x1xf32> to vector<8x16xf32>
    %5 = arith.subf %0, %4 : vector<8x16xf32>
    %6 = math.exp %5 : vector<8x16xf32>
    %cst_3 = arith.constant dense<0.000000e+00> : vector<8xf32>
    %7 = vector.multi_reduction <add>, %6, %cst_3 [1] : vector<8x16xf32> to vector<8xf32>
    %8 = vector.shape_cast %7 : vector<8xf32> to vector<8x1xf32>
    %9 = math.log %8 : vector<8x1xf32>
    %10 = arith.addf %9, %3 : vector<8x1xf32>
    %11 = tpu.iota {dimensions = array<i32: 1>} : vector<8x16xi32>
    %12 = vector.broadcast %1 : vector<8x1xi32> to vector<8x16xi32>
    %13 = arith.cmpi eq, %11, %12 : vector<8x16xi32>
    %cst_4 = arith.constant 0.000000e+00 : f32
    %14 = vector.broadcast %cst_4 : f32 to vector<8x16xf32>
    %15 = arith.select %13, %0, %14 : vector<8x16xi1>, vector<8x16xf32>
    %cst_5 = arith.constant dense<0.000000e+00> : vector<8xf32>
    %16 = vector.multi_reduction <add>, %15, %cst_5 [1] : vector<8x16xf32> to vector<8xf32>
    %17 = vector.shape_cast %16 : vector<8xf32> to vector<8x1xf32>
    %18 = arith.subf %10, %17 : vector<8x1xf32>
    %19 = vector.shape_cast %18 : vector<8x1xf32> to vector<1x8x1xf32>
    %cst_6 = arith.constant dense<0.000000e+00> : vector<1xf32>
    %20 = vector.multi_reduction <add>, %19, %cst_6 [1, 2] : vector<1x8x1xf32> to vector<1xf32>
    %21 = vector.shape_cast %20 : vector<1xf32> to vector<1x1x1xf32>
    %22 = vector.extract %21[0, 0, 0] : f32 from vector<1x1x1xf32>
    %c0_7 = arith.constant 0 : index
    %c0_8 = arith.constant 0 : index
    %23 = vector.load %arg2[%c0_7, %c0_8] : memref<16x128xf32, #tpu.memory_space<vmem>>, vector<16x128xf32>
    %cst_9 = arith.constant 0.000000e+00 : f32
    %24 = vector.broadcast %cst_9 : f32 to vector<16x128xf32>
    %25 = arith.subf %24, %23 : vector<16x128xf32>
    %cst_10 = arith.constant 0.000000e+00 : f32
    %26 = vector.broadcast %cst_10 : f32 to vector<16x128xf32>
    %27 = arith.maximumf %25, %26 : vector<16x128xf32>
    %28 = math.absf %23 : vector<16x128xf32>
    %cst_11 = arith.constant 0.000000e+00 : f32
    %29 = vector.broadcast %cst_11 : f32 to vector<16x128xf32>
    %30 = arith.subf %29, %28 : vector<16x128xf32>
    %31 = math.exp %30 : vector<16x128xf32>
    %32 = math.log1p %31 : vector<16x128xf32>
    %33 = arith.addf %27, %32 : vector<16x128xf32>
    %cst_12 = arith.constant 1.486950e+00 : f32
    %34 = vector.broadcast %cst_12 : f32 to vector<16x128xf32>
    %35 = arith.mulf %34, %23 : vector<16x128xf32>
    %cst_13 = arith.constant 1.873200e+00 : f32
    %36 = vector.broadcast %cst_13 : f32 to vector<16x128xf32>
    %37 = arith.addf %36, %35 : vector<16x128xf32>
    %38 = arith.negf %37 : vector<16x128xf32>
    %39 = math.exp %38 : vector<16x128xf32>
    %cst_14 = arith.constant 1.000000e+00 : f32
    %40 = vector.broadcast %cst_14 : f32 to vector<16x128xf32>
    %41 = arith.addf %40, %39 : vector<16x128xf32>
    %42 = arith.divf %40, %41 : vector<16x128xf32>
    %cst_15 = arith.constant 6.357600e-01 : f32
    %43 = vector.broadcast %cst_15 : f32 to vector<16x128xf32>
    %44 = arith.mulf %43, %42 : vector<16x128xf32>
    %cst_16 = arith.constant 5.000000e-01 : f32
    %45 = vector.broadcast %cst_16 : f32 to vector<16x128xf32>
    %46 = arith.mulf %45, %33 : vector<16x128xf32>
    %47 = arith.subf %44, %46 : vector<16x128xf32>
    %cst_17 = arith.constant 6.357600e-01 : f32
    %48 = vector.broadcast %cst_17 : f32 to vector<16x128xf32>
    %49 = arith.subf %47, %48 : vector<16x128xf32>
    %50 = vector.shape_cast %49 : vector<16x128xf32> to vector<1x16x128xf32>
    %cst_18 = arith.constant dense<0.000000e+00> : vector<1xf32>
    %51 = vector.multi_reduction <add>, %50, %cst_18 [1, 2] : vector<1x16x128xf32> to vector<1xf32>
    %52 = vector.shape_cast %51 : vector<1xf32> to vector<1x1x1xf32>
    %53 = vector.extract %52[0, 0, 0] : f32 from vector<1x1x1xf32>
    %cst_19 = arith.constant 0.000000e+00 : f32
    %54 = arith.subf %cst_19, %53 : f32
    %c0_20 = arith.constant 0 : index
    %c0_21 = arith.constant 0 : index
    %55 = vector.load %arg3[%c0_20, %c0_21] : memref<8x128xf32, #tpu.memory_space<vmem>>, vector<8x128xf32>
    %cst_22 = arith.constant 0.000000e+00 : f32
    %56 = vector.broadcast %cst_22 : f32 to vector<8x128xf32>
    %57 = arith.subf %56, %55 : vector<8x128xf32>
    %cst_23 = arith.constant 0.000000e+00 : f32
    %58 = vector.broadcast %cst_23 : f32 to vector<8x128xf32>
    %59 = arith.maximumf %57, %58 : vector<8x128xf32>
    %60 = math.absf %55 : vector<8x128xf32>
    %cst_24 = arith.constant 0.000000e+00 : f32
    %61 = vector.broadcast %cst_24 : f32 to vector<8x128xf32>
    %62 = arith.subf %61, %60 : vector<8x128xf32>
    %63 = math.exp %62 : vector<8x128xf32>
    %64 = math.log1p %63 : vector<8x128xf32>
    %65 = arith.addf %59, %64 : vector<8x128xf32>
    %cst_25 = arith.constant 1.486950e+00 : f32
    %66 = vector.broadcast %cst_25 : f32 to vector<8x128xf32>
    %67 = arith.mulf %66, %55 : vector<8x128xf32>
    %cst_26 = arith.constant 1.873200e+00 : f32
    %68 = vector.broadcast %cst_26 : f32 to vector<8x128xf32>
    %69 = arith.addf %68, %67 : vector<8x128xf32>
    %70 = arith.negf %69 : vector<8x128xf32>
    %71 = math.exp %70 : vector<8x128xf32>
    %cst_27 = arith.constant 1.000000e+00 : f32
    %72 = vector.broadcast %cst_27 : f32 to vector<8x128xf32>
    %73 = arith.addf %72, %71 : vector<8x128xf32>
    %74 = arith.divf %72, %73 : vector<8x128xf32>
    %cst_28 = arith.constant 6.357600e-01 : f32
    %75 = vector.broadcast %cst_28 : f32 to vector<8x128xf32>
    %76 = arith.mulf %75, %74 : vector<8x128xf32>
    %cst_29 = arith.constant 5.000000e-01 : f32
    %77 = vector.broadcast %cst_29 : f32 to vector<8x128xf32>
    %78 = arith.mulf %77, %65 : vector<8x128xf32>
    %79 = arith.subf %76, %78 : vector<8x128xf32>
    %cst_30 = arith.constant 6.357600e-01 : f32
    %80 = vector.broadcast %cst_30 : f32 to vector<8x128xf32>
    %81 = arith.subf %79, %80 : vector<8x128xf32>
    %82 = vector.shape_cast %81 : vector<8x128xf32> to vector<1x8x128xf32>
    %cst_31 = arith.constant dense<0.000000e+00> : vector<1xf32>
    %83 = vector.multi_reduction <add>, %82, %cst_31 [1, 2] : vector<1x8x128xf32> to vector<1xf32>
    %84 = vector.shape_cast %83 : vector<1xf32> to vector<1x1x1xf32>
    %85 = vector.extract %84[0, 0, 0] : f32 from vector<1x1x1xf32>
    %cst_32 = arith.constant 0.000000e+00 : f32
    %86 = arith.subf %cst_32, %85 : f32
    %87 = arith.addf %54, %86 : f32
    %c0_33 = arith.constant 0 : index
    %88 = memref.load %arg4[%c0_33] : memref<2xf32, #tpu.memory_space<smem>>
    %c1 = arith.constant 1 : index
    %89 = memref.load %arg4[%c1] : memref<2xf32, #tpu.memory_space<smem>>
    %90 = arith.mulf %22, %88 : f32
    %91 = arith.mulf %89, %87 : f32
    %92 = arith.addf %90, %91 : f32
    %c0_34 = arith.constant 0 : index
    %c0_35 = arith.constant 0 : index
    %93 = memref.load %arg5[%c0_34, %c0_35] : memref<1x1xf32, #tpu.memory_space<smem>>
    memref.store %92, %arg5[%c0_34, %c0_35] : memref<1x1xf32, #tpu.memory_space<smem>>
    return
  }
}

</mosaic_0001>

<llo_original>
// kernel: sgvlb_loss.1
$region0: #{sgvlb_loss.1}
  #allocation0 [shape = 'u32[]', space=smem, size = 0x4, offset = 0x4, fixed_abs, tag = 'smem constant byte address 0x4 - core index']
  #allocation1 [shape = 'u32[144,128]{1,0:T(1,128)}', space=vmem, size = 0x12000, scoped, tag = 'internal scratch']
  %s0 = inlined_call_operand.vmem [shape: f32[8,16], index: 0, kind: input, shape index: {}]
  %s1 = inlined_call_operand.vmem [shape: s32[8,1], index: 1, kind: input, shape index: {}]
  %s2 = inlined_call_operand.vmem [shape: f32[16,128], index: 2, kind: input, shape index: {}]
  %s3 = inlined_call_operand.vmem [shape: f32[8,128], index: 3, kind: input, shape index: {}]
  %s4 = inlined_call_operand.vmem [shape: f32[2], index: 4, kind: input, shape index: {}]
  %s5 = inlined_call_operand.hbm [shape: f32[1,1], index: 5, kind: output, shape index: {}]
  %s6 = sld [smem:[#allocation0]]
  $region34: #{sgvlb_loss.1} parent=0
    _
  %s8 = ssub.s32 1, %s6
  %s9 = scalar_select 0, %s8, %s6
  $region1: #{sgvlb_loss.1} parent=0
    #allocation2 [shape = 'u8[512]{0}', space=smem, size = 0x200, scoped, tag = 'input window, operand 4, single buffered']
    #allocation3 [shape = 's32[1]{0}', space=sflag, size = 0x4, scoped, tag = 'scoped memory for sgvlb_loss.1']
    #allocation4 [shape = 's32[1]{0}', space=sflag, size = 0x4, scoped, tag = 'scoped memory for sgvlb_loss.1']
    #allocation5 [shape = 'u8[512]{0}', space=smem, size = 0x200, scoped, tag = 'output window, operand 0, single buffered']
    %10 = vsyncpa [#allocation4], 0
    %11 = vsyncpa [#allocation3], 0
    // Predicated region
    $region2: #{sgvlb_loss.1} parent=1 // pred_check
      _
    $region3: #{sgvlb_loss.1} parent=1 // pred_check_branch
      %13 = sbr.rel (0) target = $region5
    $region4: #{sgvlb_loss.1} parent=1 // pred_region
      _
    $region5: #{sgvlb_loss.1} parent=1 // pred_fallthru
      _
    // Predicated region
    $region6: #{sgvlb_loss.1} parent=1 // pred_check
      _
    $region7: #{sgvlb_loss.1} parent=1 // pred_check_branch
      %15 = sbr.rel (0) target = $region9
    $region8: #{sgvlb_loss.1} parent=1 // pred_region
      _
    $region9: #{sgvlb_loss.1} parent=1 // pred_fallthru
      _
    // Predicated region
    $region10: #{sgvlb_loss.1} parent=1 // pred_check
      _
    $region11: #{sgvlb_loss.1} parent=1 // pred_check_branch
      %17 = sbr.rel (0) target = $region13
    $region12: #{sgvlb_loss.1} parent=1 // pred_region
      _
    $region13: #{sgvlb_loss.1} parent=1 // pred_fallthru
      _
    // Predicated region
    $region14: #{sgvlb_loss.1} parent=1 // pred_check
      _
    $region15: #{sgvlb_loss.1} parent=1 // pred_check_branch
      %19 = sbr.rel (0) target = $region17
    $region16: #{sgvlb_loss.1} parent=1 // pred_region
      _
    $region17: #{sgvlb_loss.1} parent=1 // pred_fallthru
      _
    // Predicated region
    $region18: #{sgvlb_loss.1} parent=1 // pred_check
      _
    $region19: #{sgvlb_loss.1} parent=1 // pred_check_branch
      %21 = sbr.rel (0) target = $region21
    $region20: #{sgvlb_loss.1} parent=1 // pred_region
      %s23 = ssub.s32 16, 16
      %24 = vsyncadd [#allocation4], %s23
      %s26 = sshll.u32 %s4, 4
      %s27 = int_to_ptr.vmem [resolvable:$true] %s26
      %29 = dma.vmem_to_smem %s27, 16, [#allocation2], [#allocation4]
    $region21: #{sgvlb_loss.1} parent=1 // pred_fallthru
      _
    // Predicated region
    $region22: #{sgvlb_loss.1} parent=1 // pred_check
      _
    $region23: #{sgvlb_loss.1} parent=1 // pred_check_branch
      %31 = sbr.rel (0) target = $region25
    $region24: #{sgvlb_loss.1} parent=1 // pred_region
      %32 = dma.done [#allocation4], 16
    $region25: #{sgvlb_loss.1} parent=1 // pred_fallthru
      _
    %33 = sfence
    %v34 = vld [vmem:[%s0] sm:$0xff]
    %v35 = vld [vmem:[%s1] sm:$0xff]
    %vm36 = vcmask 130048
    %v37 = vsel %vm36, %v34, -inf
    %38 = vmax.xlane.f32.xlu0 %v37
    %v39 = vpop.xlane.xlu0 %38
    %v40 = vsub.f32 %v34, %v39
    %v41 = vmul.f32 %v40, 1.442695
    %v42 = vpow.pop %v41
    %v43 = vsel %vm36, %v42, 0.0
    %44 = vadd.xlane.f32.xlu0 %v43
    %v45 = vpop.xlane.xlu0 %44
    %v46 = vlog2.pop %v45
    %v47 = vmul.f32 %v46, 0.6931472
    %v48 = vadd.f32 %v47, %v39
    %v49 = vlaneseq
    %v50 = vand.u32 %v49, 127
    %51 = vset.pattern.permute.xlu0 0
    %52 = vperm.xlu0 %51, %v35
    %v53 = vpop.permute.xlu0 %52
    %vm54 = vcmp.eq.s32.totalorder %v50, %v53
    %v55 = vsel %vm54, %v34, 0.0
    %v56 = vsel %vm36, %v55, 0.0
    %57 = vadd.xlane.f32.xlu0 %v56
    %v58 = vpop.xlane.xlu0 %57
    %v59 = vsub.f32 %v48, %v58
    %vm60 = vcmask 7168
    %v61 = vsel %vm60, %v59, 0.0
    %62 = vadd.xlane.f32.xlu0 %v61
    %v63 = vpop.xlane.xlu0 %62
    %v64 = vrot.slane %v63, 4
    %v65 = vadd.f32 %v63, %v64
    %v66 = vrot.slane %v65, 2
    %v67 = vadd.f32 %v65, %v66
    %v68 = vrot.slane %v67, 1
    %v69 = vadd.f32 %v67, %v68
    %s70 = vtos %v69
    %v71 = vld [vmem:[%s2] sm:$0xff]
    %v72 = vld [vmem:[%s2 + $0x8] sm:$0xff]
    %v73 = vsub.f32 0.0, %v71
    %v74 = vsub.f32 0.0, %v72
    %v75 = vmax.f32 %v73, 0.0
    %v76 = vmax.f32 %v74, 0.0
    %v77 = vand.u32 2147483647, %v71
    %v78 = vand.u32 2147483647, %v72
    %v79 = vsub.f32 0.0, %v77
    %v80 = vsub.f32 0.0, %v78
    %v81 = vmul.f32 %v79, 1.442695
    %v82 = vpow.pop %v81
    %v83 = vmul.f32 %v80, 1.442695
    %v84 = vpow.pop %v83
    %v85 = vadd.f32 %v82, 1.0
    %v86 = vlog2.pop %v85
    %v87 = vmul.f32 %v86, 0.6931472
    %v88 = vmul.f32 -0.5, %v82
    %v89 = vadd.f32 %v88, 1.0
    %v90 = vmul.f32 %v89, %v82
    %v91 = vand.u32 2147483647, %v82
    %vm92 = vcmp.lt.f32.partialorder %v91, 0.0004427343
    %v93 = vsel %vm92, %v90, %v87
    %v94 = vadd.f32 %v84, 1.0
    %v95 = vlog2.pop %v94
    %v96 = vmul.f32 %v95, 0.6931472
    %v97 = vmul.f32 -0.5, %v84
    %v98 = vadd.f32 %v97, 1.0
    %v99 = vmul.f32 %v98, %v84
    %v100 = vand.u32 2147483647, %v84
    %vm101 = vcmp.lt.f32.partialorder %v100, 0.0004427343
    %v102 = vsel %vm101, %v99, %v96
    %v103 = vadd.f32 %v75, %v93
    %v104 = vadd.f32 %v76, %v102
    %v105 = vmul.f32 %v71, 1.48695
    %v106 = vmul.f32 %v72, 1.48695
    %v107 = vadd.f32 %v105, 1.8732
    %v108 = vadd.f32 %v106, 1.8732
    %v109 = vxor.u32 %v107, 2147483648
    %v110 = vxor.u32 %v108, 2147483648
    %v111 = vmul.f32 %v109, 1.442695
    %v112 = vpow.pop %v111
    %v113 = vmul.f32 %v110, 1.442695
    %v114 = vpow.pop %v113
    %v115 = vadd.f32 %v112, 1.0
    %v116 = vadd.f32 %v114, 1.0
    %v117 = vrcp.pop %v115
    %v118 = vmul.f32 1.0, %v117
    %v119 = vrcp.pop %v116
    %v120 = vmul.f32 1.0, %v119
    %v121 = vmul.f32 %v118, 0.63576
    %v122 = vmul.f32 %v120, 0.63576
    %v123 = vmul.f32 %v103, 0.5
    %v124 = vmul.f32 %v104, 0.5
    %v125 = vsub.f32 %v121, %v123
    %v126 = vsub.f32 %v122, %v124
    %v127 = vsub.f32 %v125, 0.63576
    %v128 = vsub.f32 %v126, 0.63576
    %v129 = vadd.f32 %v127, %v128
    %130 = vadd.xlane.f32.xlu0 %v129
    %v131 = vpop.xlane.xlu0 %130
    %v132 = vrot.slane %v131, 4
    %v133 = vadd.f32 %v131, %v132
    %v134 = vrot.slane %v133, 2
    %v135 = vadd.f32 %v133, %v134
    %v136 = vrot.slane %v135, 1
    %v137 = vadd.f32 %v135, %v136
    %s138 = vtos %v137
    %s139 = ssub.f32 0.0, %s138
    %v140 = vld [vmem:[%s3] sm:$0xff]
    %v141 = vsub.f32 0.0, %v140
    %v142 = vmax.f32 %v141, 0.0
    %v143 = vand.u32 2147483647, %v140
    %v144 = vsub.f32 0.0, %v143
    %v145 = vmul.f32 %v144, 1.442695
    %v146 = vpow.pop %v145
    %v147 = vadd.f32 %v146, 1.0
    %v148 = vlog2.pop %v147
    %v149 = vmul.f32 %v148, 0.6931472
    %v150 = vmul.f32 -0.5, %v146
    %v151 = vadd.f32 %v150, 1.0
    %v152 = vmul.f32 %v151, %v146
    %v153 = vand.u32 2147483647, %v146
    %vm154 = vcmp.lt.f32.partialorder %v153, 0.0004427343
    %v155 = vsel %vm154, %v152, %v149
    %v156 = vadd.f32 %v142, %v155
    %v157 = vmul.f32 %v140, 1.48695
    %v158 = vadd.f32 %v157, 1.8732
    %v159 = vxor.u32 %v158, 2147483648
    %v160 = vmul.f32 %v159, 1.442695
    %v161 = vpow.pop %v160
    %v162 = vadd.f32 %v161, 1.0
    %v163 = vrcp.pop %v162
    %v164 = vmul.f32 1.0, %v163
    %v165 = vmul.f32 %v164, 0.63576
    %v166 = vmul.f32 %v156, 0.5
    %v167 = vsub.f32 %v165, %v166
    %v168 = vsub.f32 %v167, 0.63576
    %169 = vadd.xlane.f32.xlu0 %v168
    %v170 = vpop.xlane.xlu0 %169
    %v171 = vrot.slane %v170, 4
    %v172 = vadd.f32 %v170, %v171
    %v173 = vrot.slane %v172, 2
    %v174 = vadd.f32 %v172, %v173
    %v175 = vrot.slane %v174, 1
    %v176 = vadd.f32 %v174, %v175
    %s177 = vtos %v176
    %s178 = ssub.f32 0.0, %s177
    %s179 = sadd.f32 %s139, %s178
    %s180 = sld [smem:[#allocation2]]
    %s181 = sld [smem:[#allocation2 + $0x1]]
    %s182 = smul.f32 %s70, %s180
    %s183 = smul.f32 %s181, %s179
    %s184 = sadd.f32 %s182, %s183
    %s185 = scalar_lea.smem [#allocation5], 0
    %186 = sst [smem:[%s185]] %s184
    // Predicated region
    $region26: #{sgvlb_loss.1} parent=1 // pred_check
      _
    $region27: #{sgvlb_loss.1} parent=1 // pred_check_branch
      %188 = sbr.rel (0) target = $region29
    $region28: #{sgvlb_loss.1} parent=1 // pred_region
      %s190 = ssub.s32 16, 16
      %191 = vsyncadd [#allocation3], %s190
      %194 = dma.smem_to_hbm [#allocation5], 16, %s5, [#allocation3]
    $region29: #{sgvlb_loss.1} parent=1 // pred_fallthru
      _
    // Predicated region
    $region30: #{sgvlb_loss.1} parent=1 // pred_check
      _
    $region31: #{sgvlb_loss.1} parent=1 // pred_check_branch
      %196 = sbr.rel (0) target = $region33
    $region32: #{sgvlb_loss.1} parent=1 // pred_region
      %197 = dma.done [#allocation3], 16
    $region33: #{sgvlb_loss.1} parent=1 // pred_fallthru
      _
    %198 = sfence
    %199 = vsyncpa [#allocation3], 1
    %200 = vsyncpa [#allocation4], 1

</llo_original>
